<compile_context>
chip_gen: v6e
topology: v6e:2x2x1
jax: 0.10.0
libtpu: 0.0.40
codegen_flags: <defaults>
</compile_context>

<pallas_src>
import functools

import jax
import jax.numpy as jnp
from jax.experimental import pallas as pl
from jax.experimental.pallas import tpu as pltpu


_EPS = 1e-8  # torch.nn.functional.cosine_similarity default eps
# eps clamps the product of norms (max(||z||*||z_avg||, eps)); current ATen clamps
# each norm separately — results differ only for numerically ~zero rows.


# --------------------------------------------------------------------------------------
# Kernel
# --------------------------------------------------------------------------------------
def _make_sim_kernel(num_patch, n_in, cast_scratch, use_mxu, dim):
    """Kernel over one batch tile.

    refs layout: (input refs [1 stacked 3-D ref or P 2-D refs], out_ref, [f32 scratch]).
    """
    inv_p = 1.0 / num_patch

    def kernel(*refs):
        out_ref = refs[n_in]
        scr = refs[n_in + 1] if cast_scratch else None

        def load_patch(i):
            if n_in == 1:                       # stacked [P, tb, D] block
                return refs[0][i].astype(jnp.float32)
            return refs[i][...].astype(jnp.float32)

        if use_mxu:
            # Row (lane) reductions on the MXU: uses the otherwise idle
            # vector-extended slot instead of VALU adds + XLU combines.
            ones = jnp.ones((dim, 1), jnp.float32)
            rowsum = lambda x: jnp.dot(x, ones, preferred_element_type=jnp.float32)
        else:
            rowsum = lambda x: jnp.sum(x, axis=-1, keepdims=True)

        # ---- Pass 1: z_avg over patches (f32 accumulation). bf16 inputs are upcast
        # exactly once here and stashed in the f32 scratch for reuse in pass 2.
        acc = load_patch(0)
        if cast_scratch:
            scr[0] = acc
        for i in range(1, num_patch):
            zi = load_patch(i)
            if cast_scratch:
                scr[i] = zi
            acc = acc + zi
        z_avg = acc * inv_p                                   # [tb, D]
        na2 = rowsum(z_avg * z_avg)                           # [tb, 1]

        def get_f32(i):
            if cast_scratch:
                return scr[i]                                  # already f32
            return load_patch(i)                               # f32 inputs: plain vld

        # ---- Pass 2: cosine accumulation. Batch (sublane) reduce hoisted out of
        # the patch loop: one running [tb,1] vector, single sum(axis=0) at the end.
        cos_acc = jnp.zeros((z_avg.shape[0], 1), jnp.float32)
        for i in range(num_patch):
            zi = get_f32(i)                                    # [tb, D]
            dots = rowsum(zi * z_avg)                          # [tb, 1]
            nz2 = rowsum(zi * zi)                              # [tb, 1]
            # cos = dot * rsqrt(max(||z||^2 * ||z_avg||^2, eps^2))  (single EUP op)
            cos_acc = cos_acc + dots * jax.lax.rsqrt(
                jnp.maximum(nz2 * na2, _EPS * _EPS))

        # Per-tile partial sum; zero-padded batch rows contribute exactly 0.
        out_ref[...] = jnp.sum(cos_acc, axis=0, keepdims=True)[None]   # [1, 1, 1]

    return kernel


# --------------------------------------------------------------------------------------
# VMEM sizing / tiling
# --------------------------------------------------------------------------------------
def _vmem_limit_bytes():
    """Generation-aware scoped-VMEM limit (64 MiB on 128 MiB parts, 32 MiB on v7x)."""
    phys = None
    try:
        info = pltpu.get_tpu_info()
        phys = getattr(info, "vmem_capacity_bytes", None)
    except Exception:
        phys = None
    if not phys or phys <= 0:
        phys = 64 * 1024 * 1024          # conservative (v7x) default
    return int(min(phys // 2, 64 * 1024 * 1024))


def _choose_tile_b(batch, num_patch, dim, itemsize, cast_scratch, tile_b=None):
    """Pick a batch tile from the device VMEM budget (inputs + scratch + f32 temps)."""
    row_align = {4: 8, 2: 16, 1: 32}.get(int(itemsize), 8)   # native sublane tile
    vmem_limit = _vmem_limit_bytes()

    per_row = 2 * num_patch * dim * itemsize          # double-buffered input tiles
    if cast_scratch:
        per_row += num_patch * dim * 4                 # f32 upcast scratch
    per_row += 4 * dim * 4                             # in-kernel f32 temporaries

    budget = int(vmem_limit * 0.75)
    tb_max = max(row_align, (budget // max(per_row, 1)) // row_align * row_align)

    if tile_b is None:
        tb = tb_max
    else:
        tb = max(row_align, (int(tile_b) + row_align - 1) // row_align * row_align)
        tb = min(tb, tb_max)

    # Guarantee >= 2 grid tiles when the batch allows it: feeds both v7x TensorCores
    # on the "parallel" axis and lets the input DMAs double-buffer.
    if tb >= batch and batch >= 2 * row_align:
        half = (batch + 1) // 2
        tb = ((half + row_align - 1) // row_align) * row_align

    if tb >= batch:
        return batch, batch, vmem_limit                 # single tile: block == full array
    padded = ((batch + tb - 1) // tb) * tb
    return tb, padded, vmem_limit


# --------------------------------------------------------------------------------------
# Forward (Pallas)
# --------------------------------------------------------------------------------------
def _z_sim_fwd_impl(z, tile_b):
    stacked = not isinstance(z, (list, tuple))
    if stacked:
        num_patch, batch, dim = z.shape
        dtype = jnp.dtype(z.dtype)
        arrays = (z,)
    else:
        num_patch = len(z)
        batch, dim = z[0].shape
        dtype = jnp.dtype(z[0].dtype)
        arrays = tuple(z)

    cast_scratch = dtype != jnp.dtype(jnp.float32)
    use_mxu = dim >= 256
    tb, padded_b, vmem_limit = _choose_tile_b(
        batch, num_patch, dim, dtype.itemsize, cast_scratch, tile_b)

    if padded_b != batch:
        # Zero rows give cos == 0 (denominator clamps to eps), so padding is exact.
        if stacked:
            arrays = (jnp.pad(arrays[0], ((0, 0), (0, padded_b - batch), (0, 0))),)
        else:
            arrays = tuple(jnp.pad(a, ((0, padded_b - batch), (0, 0))) for a in arrays)
    num_tiles = padded_b // tb

    if stacked:
        in_specs = [pl.BlockSpec((num_patch, tb, dim), lambda b: (0, b, 0))]
        n_in = 1
    else:
        in_specs = [pl.BlockSpec((tb, dim), lambda b: (b, 0)) for _ in range(num_patch)]
        n_in = num_patch

    scratch_shapes = (
        [pltpu.VMEM((num_patch, tb, dim), jnp.float32)] if cast_scratch else [])

    partials = pl.pallas_call(
        _make_sim_kernel(num_patch, n_in, cast_scratch, use_mxu, dim),
        out_shape=jax.ShapeDtypeStruct((num_tiles, 1, 1), jnp.float32),
        grid=(num_tiles,),
        in_specs=in_specs,
        out_specs=pl.BlockSpec((1, 1, 1), lambda b: (b, 0, 0)),
        scratch_shapes=scratch_shapes,
        compiler_params=pltpu.CompilerParams(
            dimension_semantics=("parallel",),       # independent per-tile partial sums
            vmem_limit_bytes=vmem_limit,
        ),
    )(*arrays)

    # Tiny final reduction in plain JAX; divide by the *real* batch size.
    return jnp.sum(partials) / (num_patch * batch)


# --------------------------------------------------------------------------------------
# Pure-JAX (stack-free) reference / small-problem path
# --------------------------------------------------------------------------------------
def _to_patches(z):
    if isinstance(z, (list, tuple)):
        return list(z)
    return [z[i] for i in range(z.shape[0])]


def _z_sim_ref(zs):
    """Stack-free pure-JAX z_sim mirroring the PyTorch forward."""
    zs = _to_patches(zs)
    num_patch = len(zs)
    z32 = [zi.astype(jnp.float32) for zi in zs]
    z_avg = z32[0]
    for zf in z32[1:]:
        z_avg = z_avg + zf
    z_avg = z_avg / num_patch
    m = jnp.sqrt(jnp.sum(z_avg * z_avg, axis=-1))
    total = 0.0
    for zf in z32:
        d = jnp.sum(zf * z_avg, axis=-1)
        n = jnp.sqrt(jnp.sum(zf * zf, axis=-1))
        total = total + jnp.mean(d / jnp.maximum(n * m, _EPS))
    return total / num_patch


# --------------------------------------------------------------------------------------
# Analytic, stack-free backward
# --------------------------------------------------------------------------------------
def _z_sim_bwd_impl(z, g):
    zs = _to_patches(z)
    p = len(zs)
    b = zs[0].shape[0]
    z32 = [zi.astype(jnp.float32) for zi in zs]

    z_avg = z32[0]
    for zf in z32[1:]:
        z_avg = z_avg + zf
    z_avg = z_avg / p
    m = jnp.sqrt(jnp.sum(z_avg * z_avg, axis=-1, keepdims=True))        # [B,1]
    safe_m = jnp.where(m > 0, m, 1.0)

    S = jnp.zeros_like(z_avg)            # sum_i z_i / den_i                 [B,D]
    T = jnp.zeros_like(m)                # sum_i g_i d_i n_i / den_i^2       [B,1]
    stats = []
    for zf in z32:
        d = jnp.sum(zf * z_avg, axis=-1, keepdims=True)
        n = jnp.sqrt(jnp.sum(zf * zf, axis=-1, keepdims=True))
        q = n * m
        den = jnp.maximum(q, _EPS)
        gate = (q > _EPS).astype(jnp.float32)
        S = S + zf / den
        T = T + gate * d * n / (den * den)
        stats.append((d, n, den, gate))

    common = S / p - (z_avg / (p * safe_m)) * T                          # [B,D]
    scale = (g / (p * b)).astype(jnp.float32)

    grads = []
    for zf, (d, n, den, gate), z_orig in zip(z32, stats, zs):
        safe_n = jnp.where(n > 0, n, 1.0)
        direct = z_avg / den - gate * (d / (den * den)) * (m / safe_n) * zf
        grads.append(((direct + common) * scale).astype(z_orig.dtype))

    if isinstance(z, (list, tuple)):
        return tuple(grads)
    return jnp.stack(grads, axis=0)


@functools.partial(jax.custom_vjp, nondiff_argnums=(1,))
def _z_sim(z, tile_b):
    return _z_sim_fwd_impl(z, tile_b)


def _z_sim_vjp_fwd(z, tile_b):
    return _z_sim_fwd_impl(z, tile_b), z


def _z_sim_vjp_bwd(tile_b, z, g):
    return (_z_sim_bwd_impl(z, g),)


_z_sim.defvjp(_z_sim_vjp_fwd, _z_sim_vjp_bwd)


# --------------------------------------------------------------------------------------
# Public wrapper
# --------------------------------------------------------------------------------------
def similarity_loss(z_list, z_avg=None, *, tile_b=None, use_pallas=None):
    """JAX/Pallas equivalent of Similarity_Loss.forward.

    z_list: list/tuple of [B, D] arrays (fed as P separate inputs, no stack copy) or
            a stacked [P, B, D] array (fed as one 3-D block per grid step).
    z_avg:  ignored (the PyTorch module overwrites it with z_list.mean(0)).
    Returns (-z_sim, z_sim_detached), both float32 scalars.
    """
    if isinstance(z_list, (list, tuple)):
        z = tuple(z_list)
        num_patch = len(z)
        batch, dim = z[0].shape
        itemsize = jnp.dtype(z[0].dtype).itemsize
    else:
        assert z_list.ndim == 3, "expected stacked input of shape [num_patch, batch, dim]"
        z = z_list
        num_patch, batch, dim = z.shape
        itemsize = jnp.dtype(z.dtype).itemsize

    if use_pallas is None:
        # With D < 128 lanes are under-utilized and the op is launch-overhead
        # dominated; let XLA fuse the pure-JAX form for tiny problems.
        total_bytes = num_patch * batch * dim * itemsize
        use_pallas = (dim >= 128) and (total_bytes >= 256 * 1024)

    if use_pallas:
        z_sim = _z_sim(z, tile_b)
    else:
        z_sim = _z_sim_ref(z)
    return -z_sim, jax.lax.stop_gradient(z_sim)


def _reference(zs):
    s = _z_sim_ref(zs)
    return -s, s


# --------------------------------------------------------------------------------------
# Self-test
# --------------------------------------------------------------------------------------
if __name__ == "__main__":
    key = jax.random.PRNGKey(0)
    num_patch, batch, dim = 4, 16, 128

    keys = jax.random.split(key, num_patch + 1)
    z_list = [jax.random.normal(keys[i], (batch, dim), dtype=jnp.float32)
              for i in range(num_patch)]
    z_avg_in = jax.random.normal(keys[-1], (batch, dim), dtype=jnp.float32)  # ignored

    ref_neg, ref_sim = _reference(z_list)

    # 1) list-of-patches input, Pallas path (>= 2 grid tiles on the parallel axis).
    neg, sim = similarity_loss(z_list, z_avg_in, use_pallas=True)
    jax.block_until_ready((neg, sim))
    assert jnp.allclose(neg, ref_neg, atol=1e-5), (neg, ref_neg)
    assert jnp.allclose(sim, ref_sim, atol=1e-5), (sim, ref_sim)

    # 2) stacked [P,B,D] input: single 3-D block per grid step (no per-patch slicing).
    z_stacked = jnp.stack(z_list, axis=0)
    neg_s, sim_s = similarity_loss(z_stacked, use_pallas=True)
    jax.block_until_ready((neg_s, sim_s))
    assert jnp.allclose(neg_s, ref_neg, atol=1e-5), (neg_s, ref_neg)

    # 3) bf16 inputs stay bf16 over the DMA; single in-kernel upcast into f32 scratch.
    z_bf16 = [z.astype(jnp.bfloat16) for z in z_list]
    neg_b, _ = similarity_loss(z_bf16, use_pallas=True)
    jax.block_until_ready(neg_b)
    ref_neg_b, _ = _reference(z_bf16)
    assert jnp.allclose(neg_b, ref_neg_b, atol=1e-5), (neg_b, ref_neg_b)

    # 4) explicit small tile -> multi-tile + batch-padding path.
    batch2 = 12
    keys2 = jax.random.split(jax.random.PRNGKey(1), num_patch)
    z_list2 = [jax.random.normal(keys2[i], (batch2, dim), dtype=jnp.float32)
               for i in range(num_patch)]
    neg2, sim2 = similarity_loss(z_list2, tile_b=8, use_pallas=True)
    jax.block_until_ready((neg2, sim2))
    r2_neg, r2_sim = _reference(z_list2)
    assert jnp.allclose(neg2, r2_neg, atol=1e-5), (neg2, r2_neg)
    assert jnp.allclose(sim2, r2_sim, atol=1e-5), (sim2, r2_sim)

    # 5) D >= 256: lane reductions offloaded to the MXU.
    keys3 = jax.random.split(jax.random.PRNGKey(2), 2)
    z_list3 = [jax.random.normal(keys3[i], (16, 256), dtype=jnp.float32) for i in range(2)]
    neg3, _ = similarity_loss(z_list3, use_pallas=True)
    jax.block_until_ready(neg3)
    r3_neg, _ = _reference(z_list3)
    assert jnp.allclose(neg3, r3_neg, atol=1e-5), (neg3, r3_neg)

    # 6) tiny-D heuristic early-exit (pure-JAX fused path).
    z_small = [jax.random.normal(keys[i], (8, 32), dtype=jnp.float32)
               for i in range(num_patch)]
    neg4, _ = similarity_loss(z_small)
    jax.block_until_ready(neg4)
    r4_neg, _ = _reference(z_small)
    assert jnp.allclose(neg4, r4_neg, atol=1e-5), (neg4, r4_neg)

    # 7) gradients: analytic stack-free backward vs autodiff of the reference.
    g_pallas = jax.grad(lambda zs: similarity_loss(zs, use_pallas=True)[0])(tuple(z_list))
    g_ref = jax.grad(lambda zs: _reference(zs)[0])(tuple(z_list))
    jax.block_until_ready((g_pallas, g_ref))
    for ga, gb in zip(g_pallas, g_ref):
        assert jnp.allclose(ga, gb, atol=1e-5)

    # 8) gradients through the stacked-input path.
    g_stack = jax.grad(lambda zz: similarity_loss(zz, use_pallas=True)[0])(z_stacked)
    jax.block_until_ready(g_stack)
    assert jnp.allclose(g_stack, jnp.stack(g_ref, axis=0), atol=1e-5)

    print("KERNEL_OK")
</pallas_src>

<mosaic_0001>
module attributes {stable_mosaic.version = 11 : i64} {
  func.func @kernel(%arg0: i32, %arg1: memref<8x128xf32, #tpu.memory_space<vmem>>, %arg2: memref<8x128xf32, #tpu.memory_space<vmem>>, %arg3: memref<8x128xf32, #tpu.memory_space<vmem>>, %arg4: memref<8x128xf32, #tpu.memory_space<vmem>>, %arg5: memref<1x1x1xf32, #tpu.memory_space<vmem>>) attributes {dimension_semantics = [#tpu.dimension_semantics<parallel>], iteration_bounds = array<i64: 2>, scalar_prefetch = 0 : i64, scratch_operands = 0 : i64, tpu.core_type = #tpu.core_type<tc>, window_params = [{transform_indices = @transform_0, window_bounds = array<i64: 8, 128>}, {transform_indices = @transform_1, window_bounds = array<i64: 8, 128>}, {transform_indices = @transform_2, window_bounds = array<i64: 8, 128>}, {transform_indices = @transform_3, window_bounds = array<i64: 8, 128>}, {transform_indices = @transform_4, window_bounds = array<i64: 1, 1, 1>}]} {
    %c0 = arith.constant 0 : index
    %c0_0 = arith.constant 0 : index
    %0 = vector.load %arg1[%c0, %c0_0] : memref<8x128xf32, #tpu.memory_space<vmem>>, vector<8x128xf32>
    %c0_1 = arith.constant 0 : index
    %c0_2 = arith.constant 0 : index
    %1 = vector.load %arg2[%c0_1, %c0_2] : memref<8x128xf32, #tpu.memory_space<vmem>>, vector<8x128xf32>
    %2 = arith.addf %0, %1 : vector<8x128xf32>
    %c0_3 = arith.constant 0 : index
    %c0_4 = arith.constant 0 : index
    %3 = vector.load %arg3[%c0_3, %c0_4] : memref<8x128xf32, #tpu.memory_space<vmem>>, vector<8x128xf32>
    %4 = arith.addf %2, %3 : vector<8x128xf32>
    %c0_5 = arith.constant 0 : index
    %c0_6 = arith.constant 0 : index
    %5 = vector.load %arg4[%c0_5, %c0_6] : memref<8x128xf32, #tpu.memory_space<vmem>>, vector<8x128xf32>
    %6 = arith.addf %4, %5 : vector<8x128xf32>
    %cst = arith.constant 2.500000e-01 : f32
    %7 = vector.broadcast %cst : f32 to vector<8x128xf32>
    %8 = arith.mulf %6, %7 : vector<8x128xf32>
    %9 = arith.mulf %8, %8 : vector<8x128xf32>
    %cst_7 = arith.constant dense<0.000000e+00> : vector<8xf32>
    %10 = vector.multi_reduction <add>, %9, %cst_7 [1] : vector<8x128xf32> to vector<8xf32>
    %11 = vector.shape_cast %10 : vector<8xf32> to vector<8x1xf32>
    %cst_8 = arith.constant 0.000000e+00 : f32
    %12 = vector.broadcast %cst_8 : f32 to vector<8x1xf32>
    %c0_9 = arith.constant 0 : index
    %c0_10 = arith.constant 0 : index
    %13 = vector.load %arg1[%c0_9, %c0_10] : memref<8x128xf32, #tpu.memory_space<vmem>>, vector<8x128xf32>
    %14 = arith.mulf %13, %8 : vector<8x128xf32>
    %cst_11 = arith.constant dense<0.000000e+00> : vector<8xf32>
    %15 = vector.multi_reduction <add>, %14, %cst_11 [1] : vector<8x128xf32> to vector<8xf32>
    %16 = vector.shape_cast %15 : vector<8xf32> to vector<8x1xf32>
    %17 = arith.mulf %13, %13 : vector<8x128xf32>
    %cst_12 = arith.constant dense<0.000000e+00> : vector<8xf32>
    %18 = vector.multi_reduction <add>, %17, %cst_12 [1] : vector<8x128xf32> to vector<8xf32>
    %19 = vector.shape_cast %18 : vector<8xf32> to vector<8x1xf32>
    %20 = arith.mulf %19, %11 : vector<8x1xf32>
    %cst_13 = arith.constant 1.000000e-16 : f32
    %21 = vector.broadcast %cst_13 : f32 to vector<8x1xf32>
    %22 = arith.maximumf %20, %21 : vector<8x1xf32>
    %23 = math.rsqrt %22 : vector<8x1xf32>
    %24 = arith.mulf %16, %23 : vector<8x1xf32>
    %25 = arith.addf %12, %24 : vector<8x1xf32>
    %c0_14 = arith.constant 0 : index
    %c0_15 = arith.constant 0 : index
    %26 = vector.load %arg2[%c0_14, %c0_15] : memref<8x128xf32, #tpu.memory_space<vmem>>, vector<8x128xf32>
    %27 = arith.mulf %26, %8 : vector<8x128xf32>
    %cst_16 = arith.constant dense<0.000000e+00> : vector<8xf32>
    %28 = vector.multi_reduction <add>, %27, %cst_16 [1] : vector<8x128xf32> to vector<8xf32>
    %29 = vector.shape_cast %28 : vector<8xf32> to vector<8x1xf32>
    %30 = arith.mulf %26, %26 : vector<8x128xf32>
    %cst_17 = arith.constant dense<0.000000e+00> : vector<8xf32>
    %31 = vector.multi_reduction <add>, %30, %cst_17 [1] : vector<8x128xf32> to vector<8xf32>
    %32 = vector.shape_cast %31 : vector<8xf32> to vector<8x1xf32>
    %33 = arith.mulf %32, %11 : vector<8x1xf32>
    %cst_18 = arith.constant 1.000000e-16 : f32
    %34 = vector.broadcast %cst_18 : f32 to vector<8x1xf32>
    %35 = arith.maximumf %33, %34 : vector<8x1xf32>
    %36 = math.rsqrt %35 : vector<8x1xf32>
    %37 = arith.mulf %29, %36 : vector<8x1xf32>
    %38 = arith.addf %25, %37 : vector<8x1xf32>
    %c0_19 = arith.constant 0 : index
    %c0_20 = arith.constant 0 : index
    %39 = vector.load %arg3[%c0_19, %c0_20] : memref<8x128xf32, #tpu.memory_space<vmem>>, vector<8x128xf32>
    %40 = arith.mulf %39, %8 : vector<8x128xf32>
    %cst_21 = arith.constant dense<0.000000e+00> : vector<8xf32>
    %41 = vector.multi_reduction <add>, %40, %cst_21 [1] : vector<8x128xf32> to vector<8xf32>
    %42 = vector.shape_cast %41 : vector<8xf32> to vector<8x1xf32>
    %43 = arith.mulf %39, %39 : vector<8x128xf32>
    %cst_22 = arith.constant dense<0.000000e+00> : vector<8xf32>
    %44 = vector.multi_reduction <add>, %43, %cst_22 [1] : vector<8x128xf32> to vector<8xf32>
    %45 = vector.shape_cast %44 : vector<8xf32> to vector<8x1xf32>
    %46 = arith.mulf %45, %11 : vector<8x1xf32>
    %cst_23 = arith.constant 1.000000e-16 : f32
    %47 = vector.broadcast %cst_23 : f32 to vector<8x1xf32>
    %48 = arith.maximumf %46, %47 : vector<8x1xf32>
    %49 = math.rsqrt %48 : vector<8x1xf32>
    %50 = arith.mulf %42, %49 : vector<8x1xf32>
    %51 = arith.addf %38, %50 : vector<8x1xf32>
    %c0_24 = arith.constant 0 : index
    %c0_25 = arith.constant 0 : index
    %52 = vector.load %arg4[%c0_24, %c0_25] : memref<8x128xf32, #tpu.memory_space<vmem>>, vector<8x128xf32>
    %53 = arith.mulf %52, %8 : vector<8x128xf32>
    %cst_26 = arith.constant dense<0.000000e+00> : vector<8xf32>
    %54 = vector.multi_reduction <add>, %53, %cst_26 [1] : vector<8x128xf32> to vector<8xf32>
    %55 = vector.shape_cast %54 : vector<8xf32> to vector<8x1xf32>
    %56 = arith.mulf %52, %52 : vector<8x128xf32>
    %cst_27 = arith.constant dense<0.000000e+00> : vector<8xf32>
    %57 = vector.multi_reduction <add>, %56, %cst_27 [1] : vector<8x128xf32> to vector<8xf32>
    %58 = vector.shape_cast %57 : vector<8xf32> to vector<8x1xf32>
    %59 = arith.mulf %58, %11 : vector<8x1xf32>
    %cst_28 = arith.constant 1.000000e-16 : f32
    %60 = vector.broadcast %cst_28 : f32 to vector<8x1xf32>
    %61 = arith.maximumf %59, %60 : vector<8x1xf32>
    %62 = math.rsqrt %61 : vector<8x1xf32>
    %63 = arith.mulf %55, %62 : vector<8x1xf32>
    %64 = arith.addf %51, %63 : vector<8x1xf32>
    %cst_29 = arith.constant dense<0.000000e+00> : vector<1xf32>
    %65 = vector.multi_reduction <add>, %64, %cst_29 [0] : vector<8x1xf32> to vector<1xf32>
    %66 = vector.shape_cast %65 : vector<1xf32> to vector<1x1xf32>
    %67 = vector.shape_cast %66 : vector<1x1xf32> to vector<1x1x1xf32>
    %c0_30 = arith.constant 0 : index
    %c0_31 = arith.constant 0 : index
    %c0_32 = arith.constant 0 : index
    %68 = vector.load %arg5[%c0_30, %c0_31, %c0_32] : memref<1x1x1xf32, #tpu.memory_space<vmem>>, vector<1x1x1xf32>
    tpu.vector_store %arg5[%c0_30, %c0_31, %c0_32], %67 {strides = array<i32>} : memref<1x1x1xf32, #tpu.memory_space<vmem>>, vector<1x1x1xf32>,
    return
  }
  func.func @transform_0(%arg0: i32) -> (i32, i32) {
    %c0_i32 = arith.constant 0 : i32
    %c0_i32_0 = arith.constant 0 : i32
    return %arg0, %c0_i32 : i32, i32
  }
  func.func @transform_1(%arg0: i32) -> (i32, i32) {
    %c0_i32 = arith.constant 0 : i32
    %c0_i32_0 = arith.constant 0 : i32
    return %arg0, %c0_i32 : i32, i32
  }
  func.func @transform_2(%arg0: i32) -> (i32, i32) {
    %c0_i32 = arith.constant 0 : i32
    %c0_i32_0 = arith.constant 0 : i32
    return %arg0, %c0_i32 : i32, i32
  }
  func.func @transform_3(%arg0: i32) -> (i32, i32) {
    %c0_i32 = arith.constant 0 : i32
    %c0_i32_0 = arith.constant 0 : i32
    return %arg0, %c0_i32 : i32, i32
  }
  func.func @transform_4(%arg0: i32) -> (i32, i32, i32) {
    %c0_i32 = arith.constant 0 : i32
    %c0_i32_0 = arith.constant 0 : i32
    %c0_i32_1 = arith.constant 0 : i32
    return %arg0, %c0_i32, %c0_i32_0 : i32, i32, i32
  }
}

</mosaic_0001>

<llo_original>
// kernel: tpu_custom_call.1
$region0: #{tpu_custom_call.1}
  #allocation0 [shape = 'u32[]', space=smem, size = 0x4, offset = 0x4, fixed_abs, tag = 'smem constant byte address 0x4 - core index']
  #allocation1 [shape = 'u32[144,128]{1,0:T(1,128)}', space=vmem, size = 0x12000, scoped, tag = 'internal scratch']
  %s0 = inlined_call_operand.hbm [shape: f32[16,128], index: 0, kind: input, shape index: {}]
  %s1 = inlined_call_operand.hbm [shape: f32[16,128], index: 1, kind: input, shape index: {}]
  %s2 = inlined_call_operand.hbm [shape: f32[16,128], index: 2, kind: input, shape index: {}]
  %s3 = inlined_call_operand.hbm [shape: f32[16,128], index: 3, kind: input, shape index: {}]
  %s4 = inlined_call_operand.vmem [shape: f32[2,1,1], index: 4, kind: output, shape index: {}]
  %s5 = sld [smem:[#allocation0]]
  $region65: #{tpu_custom_call.1} parent=0
    _
  %s7 = ssub.s32 1, %s5
  %s8 = scalar_select 0, %s7, %s5
  $region1: #{tpu_custom_call.1} parent=0
    #allocation2 [shape = 'u8[8192]{0}', space=vmem, size = 0x2000, scoped, tag = 'input window, operand 0']
    #allocation3 [shape = 's32[2]{0}', space=sflag, size = 0x8, scoped, tag = 'scoped memory for tpu_custom_call.1']
    #allocation4 [shape = 'u8[8192]{0}', space=vmem, size = 0x2000, scoped, tag = 'input window, operand 1']
    #allocation5 [shape = 's32[2]{0}', space=sflag, size = 0x8, scoped, tag = 'scoped memory for tpu_custom_call.1']
    #allocation6 [shape = 'u8[8192]{0}', space=vmem, size = 0x2000, scoped, tag = 'input window, operand 2']
    #allocation7 [shape = 'u8[8192]{0}', space=vmem, size = 0x2000, scoped, tag = 'input window, operand 3']
    #allocation8 [shape = 's32[2]{0}', space=sflag, size = 0x8, scoped, tag = 'scoped memory for tpu_custom_call.1']
    %9 = vsyncpa [#allocation3], 0
    %s10 = scalar_lea.sflag [#allocation3], 1
    %11 = vsyncpa %s10, 0
    %12 = vsyncpa [#allocation5], 0
    %s13 = scalar_lea.sflag [#allocation5], 1
    %14 = vsyncpa %s13, 0
    %15 = vsyncpa [#allocation8], 0
    %s16 = scalar_lea.sflag [#allocation8], 1
    %17 = vsyncpa %s16, 0
    loop: start=0, step=1, limit=4
    $region2: #{tpu_custom_call.1} parent=1 // loop_pre_header
      _
    $region3: #{tpu_custom_call.1} parent=1 // loop_header
      %s19 = sphi 0, %s23
      %p20 = scmp.ge.s32.totalorder %s19, 4
      %s29 = sphi 0, %s31
      %s32 = sphi 0, %s29
      %s33 = sphi 0, %s32
      %s49 = sphi 0, %s33
      %s55 = sphi 0, %s57
      %s58 = sphi 0, %s55
      %s59 = sphi 0, %s58
      %s75 = sphi 0, %s59
      %s81 = sphi 0, %s83
      %s84 = sphi 0, %s81
      %s85 = sphi 0, %s84
      %s101 = sphi 0, %s85
      %s107 = sphi 0, %s109
      %s110 = sphi 0, %s107
      %s111 = sphi 0, %s110
      %s127 = sphi 0, %s111
      %s133 = sphi 0, %s135
      %s136 = sphi 0, %s133
      %s137 = sphi 0, %s136
      %s153 = sphi 0, %s137
    $region4: #{tpu_custom_call.1} parent=1 // loop_header_branch
      %22 = sbr.rel (%p20) target = $region8
    $region5: #{tpu_custom_call.1} parent=1 // loop_body
      %s24 = ssub.s32 %s19, 1
      %s25 = ssub.s32 %s19, 2
      %s26 = sadd.s32 %s19, 1
      %s27 = ssub.s32 %s19, %s26
      %p28 = scmp.eq.s32.totalorder %s27, 0
      %s30 = sadd.s32 %s29, 1
      %s31 = scalar_select %p28, %s29, %s30
      %p34 = pneg %p28
      %p35 = scmp.eq.s32.totalorder %s19, 1
      %p36 = por %p34, %p35
      %p37 = scmp.ne.s32.totalorder %s29, %s32
      %p38 = scmp.eq.s32.totalorder %s19, 0
      %p39 = por %p37, %p38
      %p40 = scmp.ne.s32.totalorder %s29, %s32
      %p41 = scmp.eq.s32.totalorder %s24, 1
      %p42 = por %p40, %p41
      %p43 = scmp.ne.s32.totalorder %s32, %s33
      %p44 = scmp.eq.s32.totalorder %s24, 0
      %p45 = por %p43, %p44
      %p46 = scmp.ne.s32.totalorder %s32, %s33
      %p47 = scmp.eq.s32.totalorder %s25, 1
      %p48 = por %p46, %p47
      %p50 = scmp.ne.s32.totalorder %s33, %s49
      %p51 = scmp.eq.s32.totalorder %s25, 0
      %p52 = por %p50, %p51
      %s53 = ssub.s32 %s19, %s26
      %p54 = scmp.eq.s32.totalorder %s53, 0
      %s56 = sadd.s32 %s55, 1
      %s57 = scalar_select %p54, %s55, %s56
      %p60 = pneg %p54
      %p61 = scmp.eq.s32.totalorder %s19, 1
      %p62 = por %p60, %p61
      %p63 = scmp.ne.s32.totalorder %s55, %s58
      %p64 = scmp.eq.s32.totalorder %s19, 0
      %p65 = por %p63, %p64
      %p66 = scmp.ne.s32.totalorder %s55, %s58
      %p67 = scmp.eq.s32.totalorder %s24, 1
      %p68 = por %p66, %p67
      %p69 = scmp.ne.s32.totalorder %s58, %s59
      %p70 = scmp.eq.s32.totalorder %s24, 0
      %p71 = por %p69, %p70
      %p72 = scmp.ne.s32.totalorder %s58, %s59
      %p73 = scmp.eq.s32.totalorder %s25, 1
      %p74 = por %p72, %p73
      %p76 = scmp.ne.s32.totalorder %s59, %s75
      %p77 = scmp.eq.s32.totalorder %s25, 0
      %p78 = por %p76, %p77
      %s79 = ssub.s32 %s19, %s26
      %p80 = scmp.eq.s32.totalorder %s79, 0
      %s82 = sadd.s32 %s81, 1
      %s83 = scalar_select %p80, %s81, %s82
      %p86 = pneg %p80
      %p87 = scmp.eq.s32.totalorder %s19, 1
      %p88 = por %p86, %p87
      %p89 = scmp.ne.s32.totalorder %s81, %s84
      %p90 = scmp.eq.s32.totalorder %s19, 0
      %p91 = por %p89, %p90
      %p92 = scmp.ne.s32.totalorder %s81, %s84
      %p93 = scmp.eq.s32.totalorder %s24, 1
      %p94 = por %p92, %p93
      %p95 = scmp.ne.s32.totalorder %s84, %s85
      %p96 = scmp.eq.s32.totalorder %s24, 0
      %p97 = por %p95, %p96
      %p98 = scmp.ne.s32.totalorder %s84, %s85
      %p99 = scmp.eq.s32.totalorder %s25, 1
      %p100 = por %p98, %p99
      %p102 = scmp.ne.s32.totalorder %s85, %s101
      %p103 = scmp.eq.s32.totalorder %s25, 0
      %p104 = por %p102, %p103
      %s105 = ssub.s32 %s19, %s26
      %p106 = scmp.eq.s32.totalorder %s105, 0
      %s108 = sadd.s32 %s107, 1
      %s109 = scalar_select %p106, %s107, %s108
      %p112 = pneg %p106
      %p113 = scmp.eq.s32.totalorder %s19, 1
      %p114 = por %p112, %p113
      %p115 = scmp.ne.s32.totalorder %s107, %s110
      %p116 = scmp.eq.s32.totalorder %s19, 0
      %p117 = por %p115, %p116
      %p118 = scmp.ne.s32.totalorder %s107, %s110
      %p119 = scmp.eq.s32.totalorder %s24, 1
      %p120 = por %p118, %p119
      %p121 = scmp.ne.s32.totalorder %s110, %s111
      %p122 = scmp.eq.s32.totalorder %s24, 0
      %p123 = por %p121, %p122
      %p124 = scmp.ne.s32.totalorder %s110, %s111
      %p125 = scmp.eq.s32.totalorder %s25, 1
      %p126 = por %p124, %p125
      %p128 = scmp.ne.s32.totalorder %s111, %s127
      %p129 = scmp.eq.s32.totalorder %s25, 0
      %p130 = por %p128, %p129
      %s131 = ssub.s32 %s19, %s26
      %p132 = scmp.eq.s32.totalorder %s131, 0
      %s134 = sadd.s32 %s133, 1
      %s135 = scalar_select %p132, %s133, %s134
      %p138 = pneg %p132
      %p139 = scmp.eq.s32.totalorder %s19, 1
      %p140 = por %p138, %p139
      %p141 = scmp.ne.s32.totalorder %s133, %s136
      %p142 = scmp.eq.s32.totalorder %s19, 0
      %p143 = por %p141, %p142
      %p144 = scmp.ne.s32.totalorder %s133, %s136
      %p145 = scmp.eq.s32.totalorder %s24, 1
      %p146 = por %p144, %p145
      %p147 = scmp.ne.s32.totalorder %s136, %s137
      %p148 = scmp.eq.s32.totalorder %s24, 0
      %p149 = por %p147, %p148
      %p150 = scmp.ne.s32.totalorder %s136, %s137
      %p151 = scmp.eq.s32.totalorder %s25, 1
      %p152 = por %p150, %p151
      %p154 = scmp.ne.s32.totalorder %s137, %s153
      %p155 = scmp.eq.s32.totalorder %s25, 0
      %p156 = por %p154, %p155
      %p157 = scmp.le.s32.totalorder 1, %s19
      %p158 = scmp.lt.s32.totalorder %s19, 3
      %p159 = pnand %p157, %p158
      %p160 = pneg %p159
      // Predicated region
      $region9: #{tpu_custom_call.1} parent=5 // pred_check
        _
      $region10: #{tpu_custom_call.1} parent=5 // pred_check_branch
        %162 = sbr.rel (%p159) target = $region12
      $region11: #{tpu_custom_call.1} parent=5 // pred_region
        %s163 = ssub.s32 %s19, 1
      $region12: #{tpu_custom_call.1} parent=5 // pred_fallthru
        _
      %p164 = scmp.lt.s32.totalorder %s19, 2
      // Predicated region
      $region13: #{tpu_custom_call.1} parent=5 // pred_check
        %p165 = pneg %p164
      $region14: #{tpu_custom_call.1} parent=5 // pred_check_branch
        %167 = sbr.rel (%p165) target = $region16
      $region15: #{tpu_custom_call.1} parent=5 // pred_region
        // Predicated region
        $region17: #{tpu_custom_call.1} parent=15 // pred_check
          %p168 = pneg %p39
        $region18: #{tpu_custom_call.1} parent=15 // pred_check_branch
          %170 = sbr.rel (%p168) target = $region20
        $region19: #{tpu_custom_call.1} parent=15 // pred_region
          %s171 = sand.u32 %s29, 1
          %s172 = scalar_lea.sflag [#allocation3], %s171
          %s173 = sand.u32 %s29, 1
          %s174 = smul.addr %s173, 8
          %s175 = scalar_lea.vmem [#allocation2], %s174
          %s177 = ssub.s32 128, 128
          %178 = vsyncadd %s172, %s177
          %s179 = smul.addr %s19, 128
          %s180 = scalar_lea.hbm %s0, %s179
          %s182 = sshll.u32 %s175, 4
          %s183 = int_to_ptr.vmem [resolvable:$true] %s182
          %185 = dma.hbm_to_vmem [thread:$0]  %s180, 128, %s183, %s172
        $region20: #{tpu_custom_call.1} parent=15 // pred_fallthru
          _
        // Predicated region
        $region21: #{tpu_custom_call.1} parent=15 // pred_check
          %p186 = pneg %p65
        $region22: #{tpu_custom_call.1} parent=15 // pred_check_branch
          %188 = sbr.rel (%p186) target = $region24
        $region23: #{tpu_custom_call.1} parent=15 // pred_region
          %s189 = sand.u32 %s19, 1
          %s190 = scalar_lea.sflag [#allocation5], %s189
          %s191 = sand.u32 %s55, 1
          %s192 = smul.addr %s191, 8
          %s193 = scalar_lea.vmem [#allocation4], %s192
          %s195 = ssub.s32 128, 128
          %196 = vsyncadd %s190, %s195
          %s197 = smul.addr %s19, 128
          %s198 = scalar_lea.hbm %s1, %s197
          %s200 = sshll.u32 %s193, 4
          %s201 = int_to_ptr.vmem [resolvable:$true] %s200
          %203 = dma.hbm_to_vmem [thread:$0]  %s198, 128, %s201, %s190
        $region24: #{tpu_custom_call.1} parent=15 // pred_fallthru
          _
        // Predicated region
        $region25: #{tpu_custom_call.1} parent=15 // pred_check
          %p204 = pneg %p91
        $region26: #{tpu_custom_call.1} parent=15 // pred_check_branch
          %206 = sbr.rel (%p204) target = $region28
        $region27: #{tpu_custom_call.1} parent=15 // pred_region
          %s207 = sand.u32 %s19, 1
          %s208 = scalar_lea.sflag [#allocation5], %s207
          %s209 = sand.u32 %s81, 1
          %s210 = smul.addr %s209, 8
          %s211 = scalar_lea.vmem [#allocation6], %s210
          %s213 = ssub.s32 128, 128
          %214 = vsyncadd %s208, %s213
          %s215 = smul.addr %s19, 128
          %s216 = scalar_lea.hbm %s2, %s215
          %s218 = sshll.u32 %s211, 4
          %s219 = int_to_ptr.vmem [resolvable:$true] %s218
          %221 = dma.hbm_to_vmem [thread:$0]  %s216, 128, %s219, %s208
        $region28: #{tpu_custom_call.1} parent=15 // pred_fallthru
          _
        // Predicated region
        $region29: #{tpu_custom_call.1} parent=15 // pred_check
          %p222 = pneg %p117
        $region30: #{tpu_custom_call.1} parent=15 // pred_check_branch
          %224 = sbr.rel (%p222) target = $region32
        $region31: #{tpu_custom_call.1} parent=15 // pred_region
          %s225 = sand.u32 %s107, 1
          %s226 = scalar_lea.sflag [#allocation8], %s225
          %s227 = sand.u32 %s107, 1
          %s228 = smul.addr %s227, 8
          %s229 = scalar_lea.vmem [#allocation7], %s228
          %s231 = ssub.s32 128, 128
          %232 = vsyncadd %s226, %s231
          %s233 = smul.addr %s19, 128
          %s234 = scalar_lea.hbm %s3, %s233
          %s236 = sshll.u32 %s229, 4
          %s237 = int_to_ptr.vmem [resolvable:$true] %s236
          %239 = dma.hbm_to_vmem [thread:$0]  %s234, 128, %s237, %s226
        $region32: #{tpu_custom_call.1} parent=15 // pred_fallthru
          _
      $region16: #{tpu_custom_call.1} parent=5 // pred_fallthru
        _
      %p240 = scmp.le.s32.totalorder 1, %s19
      %p241 = scmp.lt.s32.totalorder %s19, 3
      %p242 = pnand %p240, %p241
      %p243 = pneg %p242
      // Predicated region
      $region33: #{tpu_custom_call.1} parent=5 // pred_check
        _
      $region34: #{tpu_custom_call.1} parent=5 // pred_check_branch
        %245 = sbr.rel (%p242) target = $region36
      $region35: #{tpu_custom_call.1} parent=5 // pred_region
        %s246 = ssub.s32 %s19, 1
        %s247 = sand.u32 %s32, 1
        %s248 = scalar_lea.sflag [#allocation3], %s247
        %s249 = sand.u32 %s32, 1
        %s250 = smul.addr %s249, 8
        %s251 = scalar_lea.vmem [#allocation2], %s250
        // Predicated region
        $region37: #{tpu_custom_call.1} parent=35 // pred_check
          %p252 = pneg %p45
        $region38: #{tpu_custom_call.1} parent=35 // pred_check_branch
          %254 = sbr.rel (%p252) target = $region40
        $region39: #{tpu_custom_call.1} parent=35 // pred_region
          %255 = dma.done %s248, 128
        $region40: #{tpu_custom_call.1} parent=35 // pred_fallthru
          _
        %s256 = sand.u32 %s24, 1
        %s257 = scalar_lea.sflag [#allocation5], %s256
        %s258 = sand.u32 %s58, 1
        %s259 = smul.addr %s258, 8
        %s260 = scalar_lea.vmem [#allocation4], %s259
        // Predicated region
        $region41: #{tpu_custom_call.1} parent=35 // pred_check
          %p261 = pneg %p71
        $region42: #{tpu_custom_call.1} parent=35 // pred_check_branch
          %263 = sbr.rel (%p261) target = $region44
        $region43: #{tpu_custom_call.1} parent=35 // pred_region
          %264 = dma.done %s257, 128
        $region44: #{tpu_custom_call.1} parent=35 // pred_fallthru
          _
        %s265 = sand.u32 %s24, 1
        %s266 = scalar_lea.sflag [#allocation5], %s265
        %s267 = sand.u32 %s84, 1
        %s268 = smul.addr %s267, 8
        %s269 = scalar_lea.vmem [#allocation6], %s268
        // Predicated region
        $region45: #{tpu_custom_call.1} parent=35 // pred_check
          %p270 = pneg %p97
        $region46: #{tpu_custom_call.1} parent=35 // pred_check_branch
          %272 = sbr.rel (%p270) target = $region48
        $region47: #{tpu_custom_call.1} parent=35 // pred_region
          %273 = dma.done %s266, 128
        $region48: #{tpu_custom_call.1} parent=35 // pred_fallthru
          _
        %s274 = sand.u32 %s110, 1
        %s275 = scalar_lea.sflag [#allocation8], %s274
        %s276 = sand.u32 %s110, 1
        %s277 = smul.addr %s276, 8
        %s278 = scalar_lea.vmem [#allocation7], %s277
        // Predicated region
        $region49: #{tpu_custom_call.1} parent=35 // pred_check
          %p279 = pneg %p123
        $region50: #{tpu_custom_call.1} parent=35 // pred_check_branch
          %281 = sbr.rel (%p279) target = $region52
        $region51: #{tpu_custom_call.1} parent=35 // pred_region
          %282 = dma.done %s275, 128
        $region52: #{tpu_custom_call.1} parent=35 // pred_fallthru
          _
        %s283 = sand.u32 %s32, 1
        %s284 = scalar_lea.sflag [#allocation3], %s283
        %s285 = sand.u32 %s32, 1
        %s286 = smul.addr %s285, 8
        %s287 = scalar_lea.vmem [#allocation2], %s286
        %p288 = pneg %p45
        %p289 = pneg %p42
        %s290 = sand.u32 %s24, 1
        %s291 = scalar_lea.sflag [#allocation5], %s290
        %s292 = sand.u32 %s58, 1
        %s293 = smul.addr %s292, 8
        %s294 = scalar_lea.vmem [#allocation4], %s293
        %p295 = pneg %p71
        %p296 = pneg %p68
        %s297 = sand.u32 %s24, 1
        %s298 = scalar_lea.sflag [#allocation5], %s297
        %s299 = sand.u32 %s84, 1
        %s300 = smul.addr %s299, 8
        %s301 = scalar_lea.vmem [#allocation6], %s300
        %p302 = pneg %p97
        %p303 = pneg %p94
        %s304 = sand.u32 %s110, 1
        %s305 = scalar_lea.sflag [#allocation8], %s304
        %s306 = sand.u32 %s110, 1
        %s307 = smul.addr %s306, 8
        %s308 = scalar_lea.vmem [#allocation7], %s307
        %p309 = pneg %p123
        %p310 = pneg %p120
        %p311 = pneg %p149
        %p312 = pneg %p146
        %p313 = scmp.lt.s32.totalorder %s24, 1
        %s314 = scalar_select %p313, %s24, 1
        %s315 = scalar_lea.vmem %s4, %s314
        %p316 = scmp.lt.s32.totalorder %s24, 1
        %s317 = scalar_select %p316, %s24, 1
        %s318 = scalar_lea.vmem %s4, %s317
        %v319 = vld [vmem:[%s251] sm:$0xff]
        %v320 = vld [vmem:[%s260] sm:$0xff]
        %v321 = vadd.f32 %v319, %v320
        %v322 = vld [vmem:[%s269] sm:$0xff]
        %v323 = vadd.f32 %v321, %v322
        %v324 = vld [vmem:[%s278] sm:$0xff]
        %v325 = vadd.f32 %v323, %v324
        %v326 = vmul.f32 %v325, 0.25
        %v327 = vmul.f32 %v326, %v326
        %328 = vadd.xlane.f32.xlu0 %v327
        %v329 = vpop.xlane.xlu0 %328
        %v330 = vmul.f32 %v319, %v326
        %331 = vadd.xlane.f32.xlu0 %v330
        %v332 = vpop.xlane.xlu0 %331
        %v333 = vmul.f32 %v319, %v319
        %334 = vadd.xlane.f32.xlu0 %v333
        %v335 = vpop.xlane.xlu0 %334
        %v336 = vmul.f32 %v335, %v329
        %v337 = vmax.f32 %v336, 1e-16
        %v338 = vrsqrt.pop %v337
        %v339 = vmul.f32 %v332, %v338
        %v340 = vadd.f32 %v339, 0.0
        %v341 = vmul.f32 %v320, %v326
        %342 = vadd.xlane.f32.xlu0 %v341
        %v343 = vpop.xlane.xlu0 %342
        %v344 = vmul.f32 %v320, %v320
        %345 = vadd.xlane.f32.xlu0 %v344
        %v346 = vpop.xlane.xlu0 %345
        %v347 = vmul.f32 %v346, %v329
        %v348 = vmax.f32 %v347, 1e-16
        %v349 = vrsqrt.pop %v348
        %v350 = vmul.f32 %v343, %v349
        %v351 = vadd.f32 %v340, %v350
        %v352 = vmul.f32 %v322, %v326
        %353 = vadd.xlane.f32.xlu0 %v352
        %v354 = vpop.xlane.xlu0 %353
        %v355 = vmul.f32 %v322, %v322
        %356 = vadd.xlane.f32.xlu0 %v355
        %v357 = vpop.xlane.xlu0 %356
        %v358 = vmul.f32 %v357, %v329
        %v359 = vmax.f32 %v358, 1e-16
        %v360 = vrsqrt.pop %v359
        %v361 = vmul.f32 %v354, %v360
        %v362 = vadd.f32 %v351, %v361
        %v363 = vmul.f32 %v324, %v326
        %364 = vadd.xlane.f32.xlu0 %v363
        %v365 = vpop.xlane.xlu0 %364
        %v366 = vmul.f32 %v324, %v324
        %367 = vadd.xlane.f32.xlu0 %v366
        %v368 = vpop.xlane.xlu0 %367
        %v369 = vmul.f32 %v368, %v329
        %v370 = vmax.f32 %v369, 1e-16
        %v371 = vrsqrt.pop %v370
        %v372 = vmul.f32 %v365, %v371
        %v373 = vadd.f32 %v362, %v372
        %v374 = vrot.slane %v373, 4
        %v375 = vadd.f32 %v373, %v374
        %v376 = vrot.slane %v375, 2
        %v377 = vadd.f32 %v375, %v376
        %v378 = vrot.slane %v377, 1
        %v379 = vadd.f32 %v377, %v378
        %vm380 = vcmask 0
        %381 = vst.msk [vmem:[%s318] sm:$0x1] %vm380, %v379
        %p382 = scmp.lt.s32.totalorder %s24, 1
        %s383 = scalar_select %p382, %s24, 1
        %s384 = scalar_lea.vmem %s4, %s383
        // Predicated region
        $region53: #{tpu_custom_call.1} parent=35 // pred_check
          %p385 = pneg %p146
        $region54: #{tpu_custom_call.1} parent=35 // pred_check_branch
          %387 = sbr.rel (%p385) target = $region56
        $region55: #{tpu_custom_call.1} parent=35 // pred_region
          _
        $region56: #{tpu_custom_call.1} parent=35 // pred_fallthru
          _
      $region36: #{tpu_custom_call.1} parent=5 // pred_fallthru
        _
      %p388 = scmp.le.s32.totalorder 2, %s19
      // Predicated region
      $region57: #{tpu_custom_call.1} parent=5 // pred_check
        %p389 = pneg %p388
      $region58: #{tpu_custom_call.1} parent=5 // pred_check_branch
        %391 = sbr.rel (%p389) target = $region60
      $region59: #{tpu_custom_call.1} parent=5 // pred_region
        %s392 = ssub.s32 %s19, 2
        // Predicated region
        $region61: #{tpu_custom_call.1} parent=59 // pred_check
          %p393 = pneg %p152
        $region62: #{tpu_custom_call.1} parent=59 // pred_check_branch
          %395 = sbr.rel (%p393) target = $region64
        $region63: #{tpu_custom_call.1} parent=59 // pred_region
          %p396 = scmp.lt.s32.totalorder %s25, 1
          %s397 = scalar_select %p396, %s25, 1
          %s398 = scalar_lea.vmem %s4, %s397
        $region64: #{tpu_custom_call.1} parent=59 // pred_fallthru
          _
      $region60: #{tpu_custom_call.1} parent=5 // pred_fallthru
        _
    $region6: #{tpu_custom_call.1} parent=1 // loop_footer
      %s23 = sadd.s32 1, %s19
    $region7: #{tpu_custom_call.1} parent=1 // loop_footer_branch
      %18 = sbr.rel target = $region3
    $region8: #{tpu_custom_call.1} parent=1 // loop_exit
      _
    %399 = vsyncpa [#allocation3], 1
    %s400 = scalar_lea.sflag [#allocation3], 1
    %401 = vsyncpa %s400, 1
    %402 = vsyncpa [#allocation5], 1
    %s403 = scalar_lea.sflag [#allocation5], 1
    %404 = vsyncpa %s403, 1
    %405 = vsyncpa [#allocation8], 1
    %s406 = scalar_lea.sflag [#allocation8], 1
    %407 = vsyncpa %s406, 1

</llo_original>
